<compile_context>
chip_gen: v5e
topology: v5e:2x2
jax: 0.10.0
libtpu: 0.0.40
codegen_flags: <defaults>
</compile_context>

<pallas_src>
import functools
import math

import jax
import jax.numpy as jnp
from jax.experimental import pallas as pl
from jax.experimental.pallas import tpu as pltpu


# --------------------------------------------------------------------------
# Kernels
# --------------------------------------------------------------------------
def _pixelnorm_kernel_chw(x_ref, o_ref, *, scale, eps_c):
    """Block (TILE_N, C, TILE_HW); channel reduction over axis=1."""
    x = x_ref[...]
    xf = x.astype(jnp.float32)                               # square in f32
    sum_sq = jnp.sum(xf * xf, axis=1, keepdims=True)         # (TILE_N,1,TILE_HW)
    # rsqrt(mean + eps) == sqrt(C) * rsqrt(sum + C*eps); rsqrt -> EUP slot.
    inv = scale * jax.lax.rsqrt(sum_sq + eps_c)
    o_ref[...] = (x * inv.astype(x.dtype)).astype(o_ref.dtype)


def _pixelnorm_kernel_nc(x_ref, o_ref, *, scale, eps_c):
    """Block (TILE_N, C); C on the lane axis (HW == 1 latent case)."""
    x = x_ref[...]
    xf = x.astype(jnp.float32)
    sum_sq = jnp.sum(xf * xf, axis=-1, keepdims=True)        # (TILE_N, 1)
    inv = scale * jax.lax.rsqrt(sum_sq + eps_c)
    o_ref[...] = (x * inv.astype(x.dtype)).astype(o_ref.dtype)


# --------------------------------------------------------------------------
# Tile-size selection helpers
# --------------------------------------------------------------------------
def _target_bytes_for_device():
    """~4 MiB/buffer on v6e/v7x, conservative ~2 MiB on v5e / unknown."""
    try:
        kind = jax.devices()[0].device_kind.lower()
    except Exception:  # pragma: no cover - defensive
        kind = ""
    if any(tag in kind for tag in ("v6", "v7", "trillium")):
        return 4 * 1024 * 1024
    return 2 * 1024 * 1024


def _choose_tile_hw(C, HW, itemsize, target_bytes):
    """Lane-dense (multiple-of-128) HW tile, preferring divisors of HW."""
    if C * HW * itemsize <= target_bytes:
        return HW                              # whole spatial plane fits
    tile = max((target_bytes // (C * itemsize)) // 128 * 128, 128)
    tile = min(tile, HW)
    # Prefer a 128-multiple that divides HW (no masked partial tail block),
    # as long as it costs at most ~2x in step count.
    t = tile
    while t >= 128 and t >= tile // 2:
        if HW % t == 0:
            return t
        t -= 128
    return tile


def _choose_tile_n(N, per_sample_bytes, target_bytes):
    """Fuse multiple samples per block when a single slab is small."""
    tile_n = max(1, min(N, target_bytes // max(per_sample_bytes, 1)))
    if tile_n >= N:
        return N
    # Prefer a divisor of N so the last block is full.
    t = tile_n
    while t > max(1, tile_n // 2):
        if N % t == 0:
            return t
        t -= 1
    return tile_n


# --------------------------------------------------------------------------
# Wrapper
# --------------------------------------------------------------------------
def pixel_norm(x: jax.Array, *, tile_hw: int | None = None,
               target_bytes: int | None = None) -> jax.Array:
    """x: (N, C, H, W) -> (N, C, H, W), normalized across C per pixel."""
    N, C, H, W = x.shape
    HW = H * W
    itemsize = jnp.dtype(x.dtype).itemsize
    if target_bytes is None:
        target_bytes = _target_bytes_for_device()

    scale = float(math.sqrt(C))
    eps_c = float(C) * 1e-8

    cost = pl.CostEstimate(
        flops=3 * N * C * HW,               # square + reduce-add + normalize mul
        transcendentals=N * HW,             # one rsqrt per pixel
        bytes_accessed=2 * N * C * HW * itemsize,
    )

    # ---- Lane-dense fallback for the latent / mapping-network case (HW == 1).
    if HW == 1:
        x2 = x.reshape(N, C)
        tile_n = _choose_tile_n(N, C * itemsize, target_bytes)
        kernel = functools.partial(_pixelnorm_kernel_nc, scale=scale, eps_c=eps_c)
        out2 = pl.pallas_call(
            kernel,
            out_shape=jax.ShapeDtypeStruct((N, C), x.dtype),
            grid_spec=pltpu.PrefetchScalarGridSpec(
                num_scalar_prefetch=0,
                grid=(pl.cdiv(N, tile_n),),
                in_specs=[pl.BlockSpec((tile_n, C), lambda i: (i, 0))],
                out_specs=pl.BlockSpec((tile_n, C), lambda i: (i, 0)),
            ),
            compiler_params=pltpu.CompilerParams(
                dimension_semantics=("parallel",),
            ),
            cost_estimate=cost,
        )(x2)
        return out2.reshape(N, C, H, W)

    # ---- Main path: (N, C, HW) with HW on lanes.
    if tile_hw is None:
        tile_hw = _choose_tile_hw(C, HW, itemsize, target_bytes)
    tile_hw = min(tile_hw, HW)
    tile_n = _choose_tile_n(N, C * tile_hw * itemsize, target_bytes)

    x3 = x.reshape(N, C, HW)
    kernel = functools.partial(_pixelnorm_kernel_chw, scale=scale, eps_c=eps_c)

    out3 = pl.pallas_call(
        kernel,
        out_shape=jax.ShapeDtypeStruct((N, C, HW), x.dtype),
        grid_spec=pltpu.PrefetchScalarGridSpec(
            num_scalar_prefetch=0,
            grid=(pl.cdiv(N, tile_n), pl.cdiv(HW, tile_hw)),
            in_specs=[pl.BlockSpec((tile_n, C, tile_hw), lambda n, h: (n, 0, h))],
            out_specs=pl.BlockSpec((tile_n, C, tile_hw), lambda n, h: (n, 0, h)),
        ),
        compiler_params=pltpu.CompilerParams(
            # Independent blocks on both axes; v7x may shard across its 2 TCs.
            dimension_semantics=("parallel", "parallel"),
        ),
        cost_estimate=cost,
    )(x3)

    return out3.reshape(N, C, H, W)


# --------------------------------------------------------------------------
# Self-test
# --------------------------------------------------------------------------
def _ref_pixel_norm(x):
    xf = x.astype(jnp.float32)
    inv = jax.lax.rsqrt(jnp.mean(xf * xf, axis=1, keepdims=True) + 1e-8)
    return (x * inv.astype(x.dtype)).astype(x.dtype)


if __name__ == "__main__":
    key = jax.random.PRNGKey(0)
    k1, k2 = jax.random.split(key)

    # 1) Feature-map case (N, C, H, W) — exercises the fused-N, full-HW block.
    x = jax.random.normal(k1, (2, 4, 16, 16), dtype=jnp.float32)
    ref = _ref_pixel_norm(x)
    out = pixel_norm(x)
    jax.block_until_ready(out)
    assert out.shape == x.shape and out.dtype == x.dtype
    assert jnp.allclose(out, ref, atol=1e-5, rtol=1e-5)

    # 2) Force a smaller HW tile to exercise the multi-tile pipeline path.
    out_tiled = pixel_norm(x, tile_hw=128)
    jax.block_until_ready(out_tiled)
    assert jnp.allclose(out_tiled, ref, atol=1e-5, rtol=1e-5)

    # 3) Latent / mapping-network case (HW == 1) — lane-dense (N, C) path.
    x_lat = jax.random.normal(k2, (4, 32, 1, 1), dtype=jnp.float32)
    ref_lat = _ref_pixel_norm(x_lat)
    out_lat = pixel_norm(x_lat)
    jax.block_until_ready(out_lat)
    assert jnp.allclose(out_lat, ref_lat, atol=1e-5, rtol=1e-5)

    print("KERNEL_OK")
</pallas_src>

<mosaic_0001>
module attributes {stable_mosaic.version = 11 : i64} {
  func.func @_pixelnorm_kernel_chw(%arg0: i32, %arg1: i32, %arg2: memref<2x4x256xf32, #tpu.memory_space<vmem>>, %arg3: memref<2x4x256xf32, #tpu.memory_space<vmem>>) attributes {dimension_semantics = [#tpu.dimension_semantics<parallel>, #tpu.dimension_semantics<parallel>], iteration_bounds = array<i64: 1, 1>, scalar_prefetch = 0 : i64, scratch_operands = 0 : i64, tpu.core_type = #tpu.core_type<tc>, window_params = [{transform_indices = @transform_0, window_bounds = array<i64: 2, 4, 256>}, {transform_indices = @transform_1, window_bounds = array<i64: 2, 4, 256>}]} {
    %c0 = arith.constant 0 : index
    %c0_0 = arith.constant 0 : index
    %c0_1 = arith.constant 0 : index
    %0 = vector.load %arg2[%c0, %c0_0, %c0_1] : memref<2x4x256xf32, #tpu.memory_space<vmem>>, vector<2x4x256xf32>
    %1 = arith.mulf %0, %0 : vector<2x4x256xf32>
    %cst = arith.constant dense<0.000000e+00> : vector<2x256xf32>
    %2 = vector.multi_reduction <add>, %1, %cst [1] : vector<2x4x256xf32> to vector<2x256xf32>
    %3 = vector.shape_cast %2 : vector<2x256xf32> to vector<2x1x256xf32>
    %cst_2 = arith.constant 4.000000e-08 : f32
    %4 = vector.broadcast %cst_2 : f32 to vector<2x1x256xf32>
    %5 = arith.addf %3, %4 : vector<2x1x256xf32>
    %6 = math.rsqrt %5 : vector<2x1x256xf32>
    %cst_3 = arith.constant 2.000000e+00 : f32
    %7 = vector.broadcast %cst_3 : f32 to vector<2x1x256xf32>
    %8 = arith.mulf %7, %6 : vector<2x1x256xf32>
    %9 = vector.broadcast %8 : vector<2x1x256xf32> to vector<2x4x256xf32>
    %10 = arith.mulf %0, %9 : vector<2x4x256xf32>
    %c0_4 = arith.constant 0 : index
    %c0_5 = arith.constant 0 : index
    %c0_6 = arith.constant 0 : index
    %11 = vector.load %arg3[%c0_4, %c0_5, %c0_6] : memref<2x4x256xf32, #tpu.memory_space<vmem>>, vector<2x4x256xf32>
    tpu.vector_store %arg3[%c0_4, %c0_5, %c0_6], %10 {strides = array<i32>} : memref<2x4x256xf32, #tpu.memory_space<vmem>>, vector<2x4x256xf32>,
    return
  }
  func.func @transform_0(%arg0: i32, %arg1: i32) -> (i32, i32, i32) {
    %c0_i32 = arith.constant 0 : i32
    %c0_i32_0 = arith.constant 0 : i32
    return %arg0, %c0_i32, %arg1 : i32, i32, i32
  }
  func.func @transform_1(%arg0: i32, %arg1: i32) -> (i32, i32, i32) {
    %c0_i32 = arith.constant 0 : i32
    %c0_i32_0 = arith.constant 0 : i32
    return %arg0, %c0_i32, %arg1 : i32, i32, i32
  }
}

</mosaic_0001>

<llo_original>
// kernel: tpu_custom_call.1
$region0: #{tpu_custom_call.1}
  #allocation0 [shape = 'u32[]', space=smem, size = 0x4, offset = 0x4, fixed_abs, tag = 'smem constant byte address 0x4 - core index']
  #allocation1 [shape = 'u32[72,128]{1,0:T(1,128)}', space=vmem, size = 0x9000, scoped, tag = 'internal scratch']
  %s0 = inlined_call_operand.hbm [shape: f32[2,4,256], index: 0, kind: input, shape index: {}]
  %s1 = inlined_call_operand.hbm [shape: f32[2,4,256], index: 1, kind: output, shape index: {}]
  %s2 = sld [smem:[#allocation0]]
  $region18: #{tpu_custom_call.1} parent=0
    _
  %s4 = ssub.s32 1, %s2
  %s5 = scalar_select 0, %s4, %s2
  $region1: #{tpu_custom_call.1} parent=0
    #allocation2 [shape = 'u8[8192]{0}', space=vmem, size = 0x2000, scoped, tag = 'input window, operand 0, single buffered']
    #allocation3 [shape = 's32[1]{0}', space=sflag, size = 0x4, scoped, tag = 'scoped memory for tpu_custom_call.1']
    #allocation4 [shape = 's32[1]{0}', space=sflag, size = 0x4, scoped, tag = 'scoped memory for tpu_custom_call.1']
    #allocation5 [shape = 'u8[8192]{0}', space=vmem, size = 0x2000, scoped, tag = 'output window, operand 0, single buffered']
    %6 = vsyncpa [#allocation3], 0
    %7 = vsyncpa [#allocation4], 0
    // Predicated region
    $region2: #{tpu_custom_call.1} parent=1 // pred_check
      _
    $region3: #{tpu_custom_call.1} parent=1 // pred_check_branch
      %9 = sbr.rel (0) target = $region5
    $region4: #{tpu_custom_call.1} parent=1 // pred_region
      %11 = vsyncadd [#allocation3], 0
      %s12 = sshll.u32 %s0, 4
      %s13 = int_to_ptr.hbm [resolvable:$true] %s12
      %s14 = sshll.u32 [#allocation2], 4
      %s15 = int_to_ptr.vmem [resolvable:$true] %s14
      %20 = dma.hbm_to_vmem [thread:$0]  %s13, 256, %s15, [#allocation3], 128, 128, 8
    $region5: #{tpu_custom_call.1} parent=1 // pred_fallthru
      _
    // Predicated region
    $region6: #{tpu_custom_call.1} parent=1 // pred_check
      _
    $region7: #{tpu_custom_call.1} parent=1 // pred_check_branch
      %22 = sbr.rel (0) target = $region9
    $region8: #{tpu_custom_call.1} parent=1 // pred_region
      %24 = dma.done [#allocation3], 256
    $region9: #{tpu_custom_call.1} parent=1 // pred_fallthru
      _
    %v25 = vld [vmem:[#allocation2] sm:$0xff]
    %v26 = vld [vmem:[#allocation2 + $0x8] sm:$0xff]
    %v27 = vmul.f32 %v25, %v25
    %v28 = vmul.f32 %v26, %v26
    %31 = vst [vmem:[#allocation1] ss:$2 sm:$0xff] %v27
    %v32 = vld.sshfl [vmem:[#allocation1] sm:$0xff pattern:$0x75316420]
    %v33 = vld.sshfl [vmem:[#allocation1 + $0x8] sm:$0xff pattern:$0x75316420]
    %s34 = scalar_lea.vmem [#allocation1], 16
    %35 = vst [vmem:[%s34] ss:$2 sm:$0xff] %v28
    %v36 = vld.sshfl [vmem:[#allocation1 + $0x10] sm:$0xff pattern:$0x75316420]
    %v37 = vld.sshfl [vmem:[#allocation1 + $0x18] sm:$0xff pattern:$0x75316420]
    %vm42 = vcmask 1043456
    %v43 = vsel %vm42, %v32, 0.0
    %v44 = vrot.slane %v43, 4
    %v45 = vadd.f32 %v43, %v44
    %v46 = vrot.slane %v45, 2
    %v47 = vadd.f32 %v45, %v46
    %v48 = vrot.slane %v47, 1
    %v49 = vadd.f32 %v47, %v48
    %v50 = vsel %vm42, %v33, 0.0
    %v51 = vrot.slane %v50, 4
    %v52 = vadd.f32 %v50, %v51
    %v53 = vrot.slane %v52, 2
    %v54 = vadd.f32 %v52, %v53
    %v55 = vrot.slane %v54, 1
    %v56 = vadd.f32 %v54, %v55
    %v57 = vsel %vm42, %v36, 0.0
    %v58 = vrot.slane %v57, 4
    %v59 = vadd.f32 %v57, %v58
    %v60 = vrot.slane %v59, 2
    %v61 = vadd.f32 %v59, %v60
    %v62 = vrot.slane %v61, 1
    %v63 = vadd.f32 %v61, %v62
    %v64 = vsel %vm42, %v37, 0.0
    %v65 = vrot.slane %v64, 4
    %v66 = vadd.f32 %v64, %v65
    %v67 = vrot.slane %v66, 2
    %v68 = vadd.f32 %v66, %v67
    %v69 = vrot.slane %v68, 1
    %v70 = vadd.f32 %v68, %v69
    %v71 = vadd.f32 %v49, 4e-08
    %v72 = vadd.f32 %v56, 4e-08
    %v73 = vadd.f32 %v63, 4e-08
    %v74 = vadd.f32 %v70, 4e-08
    %v75 = vrsqrt.pop %v71
    %v76 = vmul.f32 %v75, %v71
    %v77 = vmul.f32 %v76, %v75
    %v78 = vmul.f32 0.5, %v77
    %v79 = vsub.f32 1.5, %v78
    %v80 = vmul.f32 %v75, %v79
    %vm81 = vweird.f32 %v71
    %vm82 = vweird.f32 %v75
    %vm83 = vmor %vm81, %vm82
    %v84 = vsel %vm83, %v75, %v80
    %v85 = vrsqrt.pop %v72
    %v86 = vmul.f32 %v85, %v72
    %v87 = vmul.f32 %v86, %v85
    %v88 = vmul.f32 0.5, %v87
    %v89 = vsub.f32 1.5, %v88
    %v90 = vmul.f32 %v85, %v89
    %vm91 = vweird.f32 %v72
    %vm92 = vweird.f32 %v85
    %vm93 = vmor %vm91, %vm92
    %v94 = vsel %vm93, %v85, %v90
    %v95 = vrsqrt.pop %v73
    %v96 = vmul.f32 %v95, %v73
    %v97 = vmul.f32 %v96, %v95
    %v98 = vmul.f32 0.5, %v97
    %v99 = vsub.f32 1.5, %v98
    %v100 = vmul.f32 %v95, %v99
    %vm101 = vweird.f32 %v73
    %vm102 = vweird.f32 %v95
    %vm103 = vmor %vm101, %vm102
    %v104 = vsel %vm103, %v95, %v100
    %v105 = vrsqrt.pop %v74
    %v106 = vmul.f32 %v105, %v74
    %v107 = vmul.f32 %v106, %v105
    %v108 = vmul.f32 0.5, %v107
    %v109 = vsub.f32 1.5, %v108
    %v110 = vmul.f32 %v105, %v109
    %vm111 = vweird.f32 %v74
    %vm112 = vweird.f32 %v105
    %vm113 = vmor %vm111, %vm112
    %v114 = vsel %vm113, %v105, %v110
    %v115 = vmul.f32 %v84, 2.0
    %v116 = vmul.f32 %v94, 2.0
    %v117 = vmul.f32 %v104, 2.0
    %v118 = vmul.f32 %v114, 2.0
    %v123 = vrot.slane %v116, 4
    %v124 = vrot.slane %v118, 4
    %v125 = vsel %vm42, %v115, %v123
    %v126 = vsel %vm42, %v117, %v124
    %v129 = vmul.f32 %v25, %v125
    %v130 = vmul.f32 %v26, %v126
    %131 = vst [vmem:[#allocation5] sm:$0xff] %v129
    %132 = vst [vmem:[#allocation5 + $0x8] sm:$0xff] %v130
    // Predicated region
    $region10: #{tpu_custom_call.1} parent=1 // pred_check
      _
    $region11: #{tpu_custom_call.1} parent=1 // pred_check_branch
      %134 = sbr.rel (0) target = $region13
    $region12: #{tpu_custom_call.1} parent=1 // pred_region
      %136 = vsyncadd [#allocation4], 0
      %s137 = sshll.u32 [#allocation5], 4
      %s138 = int_to_ptr.vmem [resolvable:$true] %s137
      %s139 = sshll.u32 %s1, 4
      %s140 = int_to_ptr.hbm [resolvable:$true] %s139
      %145 = dma.vmem_to_hbm [thread:$0]  %s138, 256, %s140, [#allocation4], 128, 128, 8
    $region13: #{tpu_custom_call.1} parent=1 // pred_fallthru
      _
    // Predicated region
    $region14: #{tpu_custom_call.1} parent=1 // pred_check
      _
    $region15: #{tpu_custom_call.1} parent=1 // pred_check_branch
      %147 = sbr.rel (0) target = $region17
    $region16: #{tpu_custom_call.1} parent=1 // pred_region
      %149 = dma.done [#allocation4], 256
    $region17: #{tpu_custom_call.1} parent=1 // pred_fallthru
      _
    %150 = vsyncpa [#allocation3], 1
    %151 = vsyncpa [#allocation4], 1

</llo_original>
